<compile_context>
chip_gen: v7x
topology: tpu7x:2x2x1
jax: 0.10.0
libtpu: 0.0.40
codegen_flags: <defaults>
</compile_context>

<pallas_src>
import functools

import jax
import jax.numpy as jnp
from jax.experimental import pallas as pl
from jax.experimental.pallas import tpu as pltpu

K = 2      # kernel size
DIL = 2    # dilation
CI = 3     # in channels
CO = 2     # out channels


def convt_gelu_kernel(w_ref, x_ref, o_ref, *, ow):
    """Fused ConvTranspose2d(k=2, stride=1, dil=2, no bias) + tanh-GELU.

    w_ref : SMEM (CI*CO*K*K,) f32 -- flat PyTorch weight, (CI, CO, KH, KW) layout
    x_ref : VMEM (CI, N, CO*OH*OW) f32 -- per-in-channel planes, zero-padded to
            (OH, OW), flattened row-major (lane stride = OW) and duplicated along
            lanes once per output channel.
    o_ref : VMEM (N, CO*OH*OW) f32 -- lane-packed output; a contiguous view of the
            NCHW (N, CO, OH, OW) result.
    """
    n_ci, n, ohw2 = x_ref.shape
    ohw = ohw2 // CO                      # OH*OW  (one output-channel lane block)

    # Per-lane output-channel mask, built once (channel co owns lanes
    # [co*ohw, (co+1)*ohw)).
    lane = jax.lax.broadcasted_iota(jnp.int32, (1, ohw2), 1)
    is_c1 = lane >= ohw

    def wvec(ci, kh, kw):
        # Per-lane weight vector: w[ci, co(lane), kh, kw] broadcast over lanes.
        w0 = w_ref[((ci * CO + 0) * K + kh) * K + kw]
        w1 = w_ref[((ci * CO + 1) * K + kh) * K + kw]
        return jnp.where(is_c1, w1, w0)

    acc = jnp.zeros((n, ohw2), jnp.float32)
    for kh in range(K):
        for kw in range(K):
            # Reduce over input channels on UN-shifted planes first; both output
            # channels are accumulated in the same lane-packed vector.
            p = x_ref[0] * wvec(0, kh, kw)
            for ci in range(1, n_ci):
                p = p + x_ref[ci] * wvec(ci, kh, kw)
            # Transposed-conv spatial shift, applied once per kernel tap.  In the
            # flattened (stride = OW) layout the (kh, kw) tap is a single lane
            # shift; the zero columns/rows added by the wrapper padding make the
            # row and channel-block boundaries self-masking.
            s = (kh * ow + kw) * DIL
            if s:
                p = jnp.concatenate(
                    [jnp.zeros((n, s), jnp.float32), p[:, : ohw2 - s]], axis=-1)
            acc = acc + p

    # GELU (tanh approximation), exactly as written in the torch module, applied
    # once to the lane-packed result (no per-channel unpack/repack).
    v1 = acc
    v2 = v1 * 0.5
    v3 = v1 * v1 * v1
    v4 = v3 * 0.044715
    v5 = v1 + v4
    v6 = v5 * 0.7978845608028654
    v7 = jnp.tanh(v6)
    v8 = v7 + 1.0
    o_ref[...] = (v2 * v8).astype(o_ref.dtype)


@jax.jit
def model_forward(x, w):
    """x: (N, CI, H, W) f32 NCHW; w: (CI, CO, K, K) f32 (PyTorch ConvTranspose2d layout)."""
    n, ci, h, wdim = x.shape
    co = w.shape[1]
    oh = h + DIL * (K - 1)
    ow = wdim + DIL * (K - 1)
    ohw = oh * ow

    # Layout plumbing kept in the (jit-fused) wrapper so the kernel never needs a
    # relayout: zero-pad each plane to the output extent, flatten the spatial dims
    # (lane stride = OW), duplicate along lanes once per output channel.  Total
    # input is ~6 KB so the extra DMA volume is irrelevant.
    xp = jnp.transpose(x, (1, 0, 2, 3))                               # (CI, N, H, W)
    xp = jnp.pad(xp, ((0, 0), (0, 0), (0, oh - h), (0, ow - wdim)))   # (CI, N, OH, OW)
    xp = xp.reshape(ci, n, ohw)
    xp = jnp.concatenate([xp] * co, axis=-1)                          # (CI, N, CO*OHW)

    out_flat = pl.pallas_call(
        functools.partial(convt_gelu_kernel, ow=ow),
        out_shape=jax.ShapeDtypeStruct((n, co * ohw), x.dtype),
        in_specs=[
            pl.BlockSpec(memory_space=pltpu.MemorySpace.SMEM),   # weight scalars
            pl.BlockSpec(memory_space=pltpu.MemorySpace.VMEM),   # packed input
        ],
        out_specs=pl.BlockSpec(memory_space=pltpu.MemorySpace.VMEM),
    )(w.reshape(-1), xp)

    # (N, CO*OH*OW) -> (N, CO, OH, OW): contiguous reshape, no data movement.
    return out_flat.reshape(n, co, oh, ow)


def reference_forward(x, w):
    """Pure-JAX reference of ConvTranspose2d(dil=2, k=2) + tanh-GELU chain."""
    N, ci, H, W = x.shape
    co = w.shape[1]
    OH = H + DIL * (K - 1)
    OW = W + DIL * (K - 1)
    y = jnp.zeros((N, co, OH, OW), jnp.float32)
    for kh in range(K):
        for kw in range(K):
            contrib = jnp.einsum('nchw,cd->ndhw', x, w[:, :, kh, kw])
            y = y.at[:, :, kh * DIL:kh * DIL + H, kw * DIL:kw * DIL + W].add(contrib)
    v1 = y
    v2 = v1 * 0.5
    v3 = v1 * v1 * v1
    v4 = v3 * 0.044715
    v5 = v1 + v4
    v6 = v5 * 0.7978845608028654
    return v2 * (jnp.tanh(v6) + 1.0)


if __name__ == "__main__":
    key = jax.random.PRNGKey(0)
    kx, kw = jax.random.split(key)
    # x1 = torch.randn(6, 3, 4, 5)
    x = jax.random.normal(kx, (6, CI, 4, 5), dtype=jnp.float32)
    # ConvTranspose2d weight layout (in_channels, out_channels, kH, kW)
    w = jax.random.normal(kw, (CI, CO, K, K), dtype=jnp.float32) * 0.2

    out = model_forward(x, w)
    out = jax.block_until_ready(out)

    ref = reference_forward(x, w)
    assert out.shape == (6, CO, 6, 7), out.shape
    assert jnp.allclose(out, ref, atol=1e-5, rtol=1e-5), float(jnp.max(jnp.abs(out - ref)))

    print("KERNEL_OK")
</pallas_src>

<mosaic_0001>
module attributes {stable_mosaic.version = 11 : i64} {
  func.func @convt_gelu_kernel(%arg0: memref<24xf32, #tpu.memory_space<smem>>, %arg1: memref<3x6x84xf32, #tpu.memory_space<vmem>>, %arg2: memref<6x84xf32, #tpu.memory_space<vmem>>) attributes {dimension_semantics = [], scalar_prefetch = 0 : i64, scratch_operands = 0 : i64, tpu.core_type = #tpu.core_type<tc>} {
    %0 = tpu.iota {dimensions = array<i32: 1>} : vector<1x84xi32>
    %c42_i32 = arith.constant 42 : i32
    %1 = vector.broadcast %c42_i32 : i32 to vector<1x84xi32>
    %2 = arith.cmpi sge, %0, %1 : vector<1x84xi32>
    %cst = arith.constant 0.000000e+00 : f32
    %3 = vector.broadcast %cst : f32 to vector<6x84xf32>
    %c0 = arith.constant 0 : index
    %c0_0 = arith.constant 0 : index
    %c0_1 = arith.constant 0 : index
    %4 = vector.load %arg1[%c0, %c0_0, %c0_1] : memref<3x6x84xf32, #tpu.memory_space<vmem>>, vector<1x6x84xf32>
    %5 = vector.shape_cast %4 : vector<1x6x84xf32> to vector<6x84xf32>
    %c0_2 = arith.constant 0 : index
    %6 = memref.load %arg0[%c0_2] : memref<24xf32, #tpu.memory_space<smem>>
    %c4 = arith.constant 4 : index
    %7 = memref.load %arg0[%c4] : memref<24xf32, #tpu.memory_space<smem>>
    %8 = vector.broadcast %7 : f32 to vector<1x84xf32>
    %9 = vector.broadcast %6 : f32 to vector<1x84xf32>
    %10 = arith.select %2, %8, %9 : vector<1x84xi1>, vector<1x84xf32>
    %11 = vector.broadcast %10 : vector<1x84xf32> to vector<6x84xf32>
    %12 = arith.mulf %5, %11 : vector<6x84xf32>
    %c1 = arith.constant 1 : index
    %c0_3 = arith.constant 0 : index
    %c0_4 = arith.constant 0 : index
    %13 = vector.load %arg1[%c1, %c0_3, %c0_4] : memref<3x6x84xf32, #tpu.memory_space<vmem>>, vector<1x6x84xf32>
    %14 = vector.shape_cast %13 : vector<1x6x84xf32> to vector<6x84xf32>
    %c8 = arith.constant 8 : index
    %15 = memref.load %arg0[%c8] : memref<24xf32, #tpu.memory_space<smem>>
    %c12 = arith.constant 12 : index
    %16 = memref.load %arg0[%c12] : memref<24xf32, #tpu.memory_space<smem>>
    %17 = vector.broadcast %16 : f32 to vector<1x84xf32>
    %18 = vector.broadcast %15 : f32 to vector<1x84xf32>
    %19 = arith.select %2, %17, %18 : vector<1x84xi1>, vector<1x84xf32>
    %20 = vector.broadcast %19 : vector<1x84xf32> to vector<6x84xf32>
    %21 = arith.mulf %14, %20 : vector<6x84xf32>
    %22 = arith.addf %12, %21 : vector<6x84xf32>
    %c2 = arith.constant 2 : index
    %c0_5 = arith.constant 0 : index
    %c0_6 = arith.constant 0 : index
    %23 = vector.load %arg1[%c2, %c0_5, %c0_6] : memref<3x6x84xf32, #tpu.memory_space<vmem>>, vector<1x6x84xf32>
    %24 = vector.shape_cast %23 : vector<1x6x84xf32> to vector<6x84xf32>
    %c16 = arith.constant 16 : index
    %25 = memref.load %arg0[%c16] : memref<24xf32, #tpu.memory_space<smem>>
    %c20 = arith.constant 20 : index
    %26 = memref.load %arg0[%c20] : memref<24xf32, #tpu.memory_space<smem>>
    %27 = vector.broadcast %26 : f32 to vector<1x84xf32>
    %28 = vector.broadcast %25 : f32 to vector<1x84xf32>
    %29 = arith.select %2, %27, %28 : vector<1x84xi1>, vector<1x84xf32>
    %30 = vector.broadcast %29 : vector<1x84xf32> to vector<6x84xf32>
    %31 = arith.mulf %24, %30 : vector<6x84xf32>
    %32 = arith.addf %22, %31 : vector<6x84xf32>
    %33 = arith.addf %3, %32 : vector<6x84xf32>
    %c0_7 = arith.constant 0 : index
    %c0_8 = arith.constant 0 : index
    %c0_9 = arith.constant 0 : index
    %34 = vector.load %arg1[%c0_7, %c0_8, %c0_9] : memref<3x6x84xf32, #tpu.memory_space<vmem>>, vector<1x6x84xf32>
    %35 = vector.shape_cast %34 : vector<1x6x84xf32> to vector<6x84xf32>
    %c1_10 = arith.constant 1 : index
    %36 = memref.load %arg0[%c1_10] : memref<24xf32, #tpu.memory_space<smem>>
    %c5 = arith.constant 5 : index
    %37 = memref.load %arg0[%c5] : memref<24xf32, #tpu.memory_space<smem>>
    %38 = vector.broadcast %37 : f32 to vector<1x84xf32>
    %39 = vector.broadcast %36 : f32 to vector<1x84xf32>
    %40 = arith.select %2, %38, %39 : vector<1x84xi1>, vector<1x84xf32>
    %41 = vector.broadcast %40 : vector<1x84xf32> to vector<6x84xf32>
    %42 = arith.mulf %35, %41 : vector<6x84xf32>
    %c1_11 = arith.constant 1 : index
    %c0_12 = arith.constant 0 : index
    %c0_13 = arith.constant 0 : index
    %43 = vector.load %arg1[%c1_11, %c0_12, %c0_13] : memref<3x6x84xf32, #tpu.memory_space<vmem>>, vector<1x6x84xf32>
    %44 = vector.shape_cast %43 : vector<1x6x84xf32> to vector<6x84xf32>
    %c9 = arith.constant 9 : index
    %45 = memref.load %arg0[%c9] : memref<24xf32, #tpu.memory_space<smem>>
    %c13 = arith.constant 13 : index
    %46 = memref.load %arg0[%c13] : memref<24xf32, #tpu.memory_space<smem>>
    %47 = vector.broadcast %46 : f32 to vector<1x84xf32>
    %48 = vector.broadcast %45 : f32 to vector<1x84xf32>
    %49 = arith.select %2, %47, %48 : vector<1x84xi1>, vector<1x84xf32>
    %50 = vector.broadcast %49 : vector<1x84xf32> to vector<6x84xf32>
    %51 = arith.mulf %44, %50 : vector<6x84xf32>
    %52 = arith.addf %42, %51 : vector<6x84xf32>
    %c2_14 = arith.constant 2 : index
    %c0_15 = arith.constant 0 : index
    %c0_16 = arith.constant 0 : index
    %53 = vector.load %arg1[%c2_14, %c0_15, %c0_16] : memref<3x6x84xf32, #tpu.memory_space<vmem>>, vector<1x6x84xf32>
    %54 = vector.shape_cast %53 : vector<1x6x84xf32> to vector<6x84xf32>
    %c17 = arith.constant 17 : index
    %55 = memref.load %arg0[%c17] : memref<24xf32, #tpu.memory_space<smem>>
    %c21 = arith.constant 21 : index
    %56 = memref.load %arg0[%c21] : memref<24xf32, #tpu.memory_space<smem>>
    %57 = vector.broadcast %56 : f32 to vector<1x84xf32>
    %58 = vector.broadcast %55 : f32 to vector<1x84xf32>
    %59 = arith.select %2, %57, %58 : vector<1x84xi1>, vector<1x84xf32>
    %60 = vector.broadcast %59 : vector<1x84xf32> to vector<6x84xf32>
    %61 = arith.mulf %54, %60 : vector<6x84xf32>
    %62 = arith.addf %52, %61 : vector<6x84xf32>
    %cst_17 = arith.constant 0.000000e+00 : f32
    %63 = vector.broadcast %cst_17 : f32 to vector<6x2xf32>
    %64 = vector.extract_strided_slice %62 {offsets = [0, 0], sizes = [6, 82], strides = [1, 1]} : vector<6x84xf32> to vector<6x82xf32>
    %65 = tpu.concatenate %63, %64 in 1 : vector<6x2xf32>, vector<6x82xf32> -> vector<6x84xf32>
    %66 = arith.addf %33, %65 : vector<6x84xf32>
    %c0_18 = arith.constant 0 : index
    %c0_19 = arith.constant 0 : index
    %c0_20 = arith.constant 0 : index
    %67 = vector.load %arg1[%c0_18, %c0_19, %c0_20] : memref<3x6x84xf32, #tpu.memory_space<vmem>>, vector<1x6x84xf32>
    %68 = vector.shape_cast %67 : vector<1x6x84xf32> to vector<6x84xf32>
    %c2_21 = arith.constant 2 : index
    %69 = memref.load %arg0[%c2_21] : memref<24xf32, #tpu.memory_space<smem>>
    %c6 = arith.constant 6 : index
    %70 = memref.load %arg0[%c6] : memref<24xf32, #tpu.memory_space<smem>>
    %71 = vector.broadcast %70 : f32 to vector<1x84xf32>
    %72 = vector.broadcast %69 : f32 to vector<1x84xf32>
    %73 = arith.select %2, %71, %72 : vector<1x84xi1>, vector<1x84xf32>
    %74 = vector.broadcast %73 : vector<1x84xf32> to vector<6x84xf32>
    %75 = arith.mulf %68, %74 : vector<6x84xf32>
    %c1_22 = arith.constant 1 : index
    %c0_23 = arith.constant 0 : index
    %c0_24 = arith.constant 0 : index
    %76 = vector.load %arg1[%c1_22, %c0_23, %c0_24] : memref<3x6x84xf32, #tpu.memory_space<vmem>>, vector<1x6x84xf32>
    %77 = vector.shape_cast %76 : vector<1x6x84xf32> to vector<6x84xf32>
    %c10 = arith.constant 10 : index
    %78 = memref.load %arg0[%c10] : memref<24xf32, #tpu.memory_space<smem>>
    %c14 = arith.constant 14 : index
    %79 = memref.load %arg0[%c14] : memref<24xf32, #tpu.memory_space<smem>>
    %80 = vector.broadcast %79 : f32 to vector<1x84xf32>
    %81 = vector.broadcast %78 : f32 to vector<1x84xf32>
    %82 = arith.select %2, %80, %81 : vector<1x84xi1>, vector<1x84xf32>
    %83 = vector.broadcast %82 : vector<1x84xf32> to vector<6x84xf32>
    %84 = arith.mulf %77, %83 : vector<6x84xf32>
    %85 = arith.addf %75, %84 : vector<6x84xf32>
    %c2_25 = arith.constant 2 : index
    %c0_26 = arith.constant 0 : index
    %c0_27 = arith.constant 0 : index
    %86 = vector.load %arg1[%c2_25, %c0_26, %c0_27] : memref<3x6x84xf32, #tpu.memory_space<vmem>>, vector<1x6x84xf32>
    %87 = vector.shape_cast %86 : vector<1x6x84xf32> to vector<6x84xf32>
    %c18 = arith.constant 18 : index
    %88 = memref.load %arg0[%c18] : memref<24xf32, #tpu.memory_space<smem>>
    %c22 = arith.constant 22 : index
    %89 = memref.load %arg0[%c22] : memref<24xf32, #tpu.memory_space<smem>>
    %90 = vector.broadcast %89 : f32 to vector<1x84xf32>
    %91 = vector.broadcast %88 : f32 to vector<1x84xf32>
    %92 = arith.select %2, %90, %91 : vector<1x84xi1>, vector<1x84xf32>
    %93 = vector.broadcast %92 : vector<1x84xf32> to vector<6x84xf32>
    %94 = arith.mulf %87, %93 : vector<6x84xf32>
    %95 = arith.addf %85, %94 : vector<6x84xf32>
    %cst_28 = arith.constant 0.000000e+00 : f32
    %96 = vector.broadcast %cst_28 : f32 to vector<6x14xf32>
    %97 = vector.extract_strided_slice %95 {offsets = [0, 0], sizes = [6, 70], strides = [1, 1]} : vector<6x84xf32> to vector<6x70xf32>
    %98 = tpu.concatenate %96, %97 in 1 : vector<6x14xf32>, vector<6x70xf32> -> vector<6x84xf32>
    %99 = arith.addf %66, %98 : vector<6x84xf32>
    %c0_29 = arith.constant 0 : index
    %c0_30 = arith.constant 0 : index
    %c0_31 = arith.constant 0 : index
    %100 = vector.load %arg1[%c0_29, %c0_30, %c0_31] : memref<3x6x84xf32, #tpu.memory_space<vmem>>, vector<1x6x84xf32>
    %101 = vector.shape_cast %100 : vector<1x6x84xf32> to vector<6x84xf32>
    %c3 = arith.constant 3 : index
    %102 = memref.load %arg0[%c3] : memref<24xf32, #tpu.memory_space<smem>>
    %c7 = arith.constant 7 : index
    %103 = memref.load %arg0[%c7] : memref<24xf32, #tpu.memory_space<smem>>
    %104 = vector.broadcast %103 : f32 to vector<1x84xf32>
    %105 = vector.broadcast %102 : f32 to vector<1x84xf32>
    %106 = arith.select %2, %104, %105 : vector<1x84xi1>, vector<1x84xf32>
    %107 = vector.broadcast %106 : vector<1x84xf32> to vector<6x84xf32>
    %108 = arith.mulf %101, %107 : vector<6x84xf32>
    %c1_32 = arith.constant 1 : index
    %c0_33 = arith.constant 0 : index
    %c0_34 = arith.constant 0 : index
    %109 = vector.load %arg1[%c1_32, %c0_33, %c0_34] : memref<3x6x84xf32, #tpu.memory_space<vmem>>, vector<1x6x84xf32>
    %110 = vector.shape_cast %109 : vector<1x6x84xf32> to vector<6x84xf32>
    %c11 = arith.constant 11 : index
    %111 = memref.load %arg0[%c11] : memref<24xf32, #tpu.memory_space<smem>>
    %c15 = arith.constant 15 : index
    %112 = memref.load %arg0[%c15] : memref<24xf32, #tpu.memory_space<smem>>
    %113 = vector.broadcast %112 : f32 to vector<1x84xf32>
    %114 = vector.broadcast %111 : f32 to vector<1x84xf32>
    %115 = arith.select %2, %113, %114 : vector<1x84xi1>, vector<1x84xf32>
    %116 = vector.broadcast %115 : vector<1x84xf32> to vector<6x84xf32>
    %117 = arith.mulf %110, %116 : vector<6x84xf32>
    %118 = arith.addf %108, %117 : vector<6x84xf32>
    %c2_35 = arith.constant 2 : index
    %c0_36 = arith.constant 0 : index
    %c0_37 = arith.constant 0 : index
    %119 = vector.load %arg1[%c2_35, %c0_36, %c0_37] : memref<3x6x84xf32, #tpu.memory_space<vmem>>, vector<1x6x84xf32>
    %120 = vector.shape_cast %119 : vector<1x6x84xf32> to vector<6x84xf32>
    %c19 = arith.constant 19 : index
    %121 = memref.load %arg0[%c19] : memref<24xf32, #tpu.memory_space<smem>>
    %c23 = arith.constant 23 : index
    %122 = memref.load %arg0[%c23] : memref<24xf32, #tpu.memory_space<smem>>
    %123 = vector.broadcast %122 : f32 to vector<1x84xf32>
    %124 = vector.broadcast %121 : f32 to vector<1x84xf32>
    %125 = arith.select %2, %123, %124 : vector<1x84xi1>, vector<1x84xf32>
    %126 = vector.broadcast %125 : vector<1x84xf32> to vector<6x84xf32>
    %127 = arith.mulf %120, %126 : vector<6x84xf32>
    %128 = arith.addf %118, %127 : vector<6x84xf32>
    %cst_38 = arith.constant 0.000000e+00 : f32
    %129 = vector.broadcast %cst_38 : f32 to vector<6x16xf32>
    %130 = vector.extract_strided_slice %128 {offsets = [0, 0], sizes = [6, 68], strides = [1, 1]} : vector<6x84xf32> to vector<6x68xf32>
    %131 = tpu.concatenate %129, %130 in 1 : vector<6x16xf32>, vector<6x68xf32> -> vector<6x84xf32>
    %132 = arith.addf %99, %131 : vector<6x84xf32>
    %cst_39 = arith.constant 5.000000e-01 : f32
    %133 = vector.broadcast %cst_39 : f32 to vector<6x84xf32>
    %134 = arith.mulf %132, %133 : vector<6x84xf32>
    %135 = arith.mulf %132, %132 : vector<6x84xf32>
    %136 = arith.mulf %135, %132 : vector<6x84xf32>
    %cst_40 = arith.constant 4.471500e-02 : f32
    %137 = vector.broadcast %cst_40 : f32 to vector<6x84xf32>
    %138 = arith.mulf %136, %137 : vector<6x84xf32>
    %139 = arith.addf %132, %138 : vector<6x84xf32>
    %cst_41 = arith.constant 0.797884583 : f32
    %140 = vector.broadcast %cst_41 : f32 to vector<6x84xf32>
    %141 = arith.mulf %139, %140 : vector<6x84xf32>
    %142 = math.tanh %141 : vector<6x84xf32>
    %cst_42 = arith.constant 1.000000e+00 : f32
    %143 = vector.broadcast %cst_42 : f32 to vector<6x84xf32>
    %144 = arith.addf %142, %143 : vector<6x84xf32>
    %145 = arith.mulf %134, %144 : vector<6x84xf32>
    %c0_43 = arith.constant 0 : index
    %c0_44 = arith.constant 0 : index
    %146 = vector.load %arg2[%c0_43, %c0_44] : memref<6x84xf32, #tpu.memory_space<vmem>>, vector<6x84xf32>
    tpu.vector_store %arg2[%c0_43, %c0_44], %145 {strides = array<i32>} : memref<6x84xf32, #tpu.memory_space<vmem>>, vector<6x84xf32>,
    return
  }
}

</mosaic_0001>

<llo_original>
// kernel: model_forward.1
$region0: #{model_forward.1}
  #allocation0 [shape = 'u32[]', space=smem, size = 0x4, offset = 0x4, fixed_abs, tag = 'smem constant byte address 0x4 - core index']
  #allocation1 [shape = 'u32[144,128]{1,0:T(1,128)}', space=vmem, size = 0x12000, scoped, tag = 'internal scratch']
  %s0 = inlined_call_operand.vmem [shape: f32[24], index: 0, kind: input, shape index: {}]
  %s1 = inlined_call_operand.vmem [shape: f32[3,6,84], index: 1, kind: input, shape index: {}]
  %s2 = inlined_call_operand.vmem [shape: f32[6,84], index: 2, kind: output, shape index: {}]
  %s3 = sld [smem:[#allocation0]]
  $region22: #{model_forward.1} parent=0
    _
  %s5 = ssub.s32 1, %s3
  %s6 = scalar_select 0, %s5, %s3
  $region1: #{model_forward.1} parent=0
    #allocation2 [shape = 'u8[512]{0}', space=smem, size = 0x200, scoped, tag = 'input window, operand 0, single buffered']
    #allocation3 [shape = 's32[1]{0}', space=sflag, size = 0x4, scoped, tag = 'scoped memory for model_forward.1']
    %7 = vsyncpa [#allocation3], 0
    // Predicated region
    $region2: #{model_forward.1} parent=1 // pred_check
      _
    $region3: #{model_forward.1} parent=1 // pred_check_branch
      %9 = sbr.rel (0) target = $region5
    $region4: #{model_forward.1} parent=1 // pred_region
      %s11 = ssub.s32 16, 16
      %12 = vsyncadd [#allocation3], %s11
      %s14 = sshll.u32 %s0, 4
      %s15 = int_to_ptr.vmem [resolvable:$true] %s14
      %17 = dma.vmem_to_smem %s15, 16, [#allocation2], [#allocation3]
    $region5: #{model_forward.1} parent=1 // pred_fallthru
      _
    // Predicated region
    $region6: #{model_forward.1} parent=1 // pred_check
      _
    $region7: #{model_forward.1} parent=1 // pred_check_branch
      %19 = sbr.rel (0) target = $region9
    $region8: #{model_forward.1} parent=1 // pred_region
      _
    $region9: #{model_forward.1} parent=1 // pred_fallthru
      _
    // Predicated region
    $region10: #{model_forward.1} parent=1 // pred_check
      _
    $region11: #{model_forward.1} parent=1 // pred_check_branch
      %21 = sbr.rel (0) target = $region13
    $region12: #{model_forward.1} parent=1 // pred_region
      %22 = dma.done [#allocation3], 16
    $region13: #{model_forward.1} parent=1 // pred_fallthru
      _
    %23 = sfence
    %v24 = vlaneseq
    %v25 = vand.u32 %v24, 127
    %vm26 = vcmp.ge.s32.totalorder %v25, 42
    %v27 = vld [vmem:[%s1] sm:$0x3f]
    %s28 = sld [smem:[#allocation2]]
    %s29 = sld [smem:[#allocation2 + $0x4]]
    %v30 = vstv %s29
    %v31 = vstv %s28
    %v32 = vsel %vm26, %v30, %v31
    %v33 = vmul.f32 %v27, %v32
    %s34 = scalar_lea.vmem %s1, 8
    %v35 = vld [vmem:[%s34] sm:$0x3f]
    %s36 = sld [smem:[#allocation2 + $0x8]]
    %s37 = sld [smem:[#allocation2 + $0xc]]
    %v38 = vstv %s37
    %v39 = vstv %s36
    %v40 = vsel %vm26, %v38, %v39
    %v41 = vmul.f32 %v35, %v40
    %v42 = vadd.f32 %v33, %v41
    %s43 = scalar_lea.vmem %s1, 16
    %v44 = vld [vmem:[%s43] sm:$0x3f]
    %s45 = sld [smem:[#allocation2 + $0x10]]
    %s46 = sld [smem:[#allocation2 + $0x14]]
    %v47 = vstv %s46
    %v48 = vstv %s45
    %v49 = vsel %vm26, %v47, %v48
    %v50 = vmul.f32 %v44, %v49
    %v51 = vadd.f32 %v42, %v50
    %v52 = vadd.f32 %v51, 0.0
    %s53 = sld [smem:[#allocation2 + $0x1]]
    %s54 = sld [smem:[#allocation2 + $0x5]]
    %v55 = vstv %s54
    %v56 = vstv %s53
    %v57 = vsel %vm26, %v55, %v56
    %v58 = vmul.f32 %v27, %v57
    %s59 = sld [smem:[#allocation2 + $0x9]]
    %s60 = sld [smem:[#allocation2 + $0xd]]
    %v61 = vstv %s60
    %v62 = vstv %s59
    %v63 = vsel %vm26, %v61, %v62
    %v64 = vmul.f32 %v35, %v63
    %v65 = vadd.f32 %v58, %v64
    %s66 = sld [smem:[#allocation2 + $0x11]]
    %s67 = sld [smem:[#allocation2 + $0x15]]
    %v68 = vstv %s67
    %v69 = vstv %s66
    %v70 = vsel %vm26, %v68, %v69
    %v71 = vmul.f32 %v44, %v70
    %v72 = vadd.f32 %v65, %v71
    %74 = vrot.lane.b32.xlu0 %v72, 2
    %v75 = vpop.permute.xlu0 %74
    %vm77 = vcmask 15360
    %v78 = vsel %vm77, 0.0, %v75
    %v79 = vadd.f32 %v52, %v78
    %s80 = sld [smem:[#allocation2 + $0x2]]
    %s81 = sld [smem:[#allocation2 + $0x6]]
    %v82 = vstv %s81
    %v83 = vstv %s80
    %v84 = vsel %vm26, %v82, %v83
    %v85 = vmul.f32 %v27, %v84
    %s86 = sld [smem:[#allocation2 + $0xa]]
    %s87 = sld [smem:[#allocation2 + $0xe]]
    %v88 = vstv %s87
    %v89 = vstv %s86
    %v90 = vsel %vm26, %v88, %v89
    %v91 = vmul.f32 %v35, %v90
    %v92 = vadd.f32 %v85, %v91
    %s93 = sld [smem:[#allocation2 + $0x12]]
    %s94 = sld [smem:[#allocation2 + $0x16]]
    %v95 = vstv %s94
    %v96 = vstv %s93
    %v97 = vsel %vm26, %v95, %v96
    %v98 = vmul.f32 %v44, %v97
    %v99 = vadd.f32 %v92, %v98
    %101 = vrot.lane.b32.xlu0 %v99, 14
    %v102 = vpop.permute.xlu0 %101
    %vm104 = vcmask 113664
    %v105 = vsel %vm104, 0.0, %v102
    %v106 = vadd.f32 %v79, %v105
    %s107 = sld [smem:[#allocation2 + $0x3]]
    %s108 = sld [smem:[#allocation2 + $0x7]]
    %v109 = vstv %s108
    %v110 = vstv %s107
    %v111 = vsel %vm26, %v109, %v110
    %v112 = vmul.f32 %v27, %v111
    %s113 = sld [smem:[#allocation2 + $0xb]]
    %s114 = sld [smem:[#allocation2 + $0xf]]
    %v115 = vstv %s114
    %v116 = vstv %s113
    %v117 = vsel %vm26, %v115, %v116
    %v118 = vmul.f32 %v35, %v117
    %v119 = vadd.f32 %v112, %v118
    %s120 = sld [smem:[#allocation2 + $0x13]]
    %s121 = sld [smem:[#allocation2 + $0x17]]
    %v122 = vstv %s121
    %v123 = vstv %s120
    %v124 = vsel %vm26, %v122, %v123
    %v125 = vmul.f32 %v44, %v124
    %v126 = vadd.f32 %v119, %v125
    %128 = vrot.lane.b32.xlu0 %v126, 16
    %v129 = vpop.permute.xlu0 %128
    %vm131 = vcmask 130048
    %v132 = vsel %vm131, 0.0, %v129
    %v133 = vadd.f32 %v106, %v132
    %v134 = vmul.f32 %v133, 0.5
    %v135 = vmul.f32 %v133, %v133
    %v136 = vmul.f32 %v135, %v133
    %v137 = vmul.f32 %v136, 0.044715
    %v138 = vadd.f32 %v133, %v137
    %v139 = vmul.f32 %v138, 0.7978846
    %v140 = vtanh.pop %v139
    %v141 = vadd.f32 %v140, 1.0
    %v142 = vmul.f32 %v134, %v141
    %vm143 = vcmask 685056
    %144 = vst.msk [vmem:[%s2] sm:$0x3f] %vm143, %v142
    // Predicated region
    $region14: #{model_forward.1} parent=1 // pred_check
      _
    $region15: #{model_forward.1} parent=1 // pred_check_branch
      %146 = sbr.rel (0) target = $region17
    $region16: #{model_forward.1} parent=1 // pred_region
      _
    $region17: #{model_forward.1} parent=1 // pred_fallthru
      _
    // Predicated region
    $region18: #{model_forward.1} parent=1 // pred_check
      _
    $region19: #{model_forward.1} parent=1 // pred_check_branch
      %148 = sbr.rel (0) target = $region21
    $region20: #{model_forward.1} parent=1 // pred_region
      _
    $region21: #{model_forward.1} parent=1 // pred_fallthru
      _
    %149 = vsyncpa [#allocation3], 1

</llo_original>
